<compile_context>
chip_gen: v7x
topology: tpu7x:2x2x1
jax: 0.10.0
libtpu: 0.0.40
codegen_flags: <defaults>
</compile_context>

<pallas_src>
import jax
import jax.numpy as jnp
from jax.experimental import pallas as pl
from jax.experimental.pallas import tpu as pltpu

# Small, module-consistent shapes
B, S, H, C, V = 8, 8, 32, 2, 32   # batch, seq, hidden, num_labels, vocab
LANES = 128                       # vreg lane width -> lane-dense output slab

# Column layout of the single packed f32 [B, 128] output slab
LOGITS_OFF = 0                    # cols [0, C)        : logits
SOFTMAX_OFF = C                   # cols [C, 2C)       : softmax(dim=1)
PRED_COL = 2 * C                  # argmax index (stored as f32)
ISCORRECT_COL = 2 * C + 1         # per-example correctness (stored as f32)
LOSS_COL = 2 * C + 2              # scalar CE loss
CORRECTS_COL = 2 * C + 3          # scalar #correct (stored as f32)
F1_COL = 2 * C + 4                # scalar binary F1
PER_EXAMPLE_COLS = 2 * C + 2      # logits + softmax + pred + correct


def train_op_kernel(ids_ref, mask_ref, labels_ref, table_ref, w_ref, b_ref,
                    out_ref):
    ids = ids_ref[...]                                   # [B, S] int32
    mask = mask_ref[...].astype(jnp.float32)             # [B, S] f32
    labels = labels_ref[...]                             # [B, 1] int32

    # ---- synthetic "model": embedding lookup + masked mean pool + head ----
    # Gather expressed as per-vocab masked counts (fused where, no extra cast
    # or multiply pass):
    #   cnt[b, v] = sum_s mask[b, s] * [ids[b, s] == v]
    v_iota = jax.lax.broadcasted_iota(jnp.int32, (B, S, V), 2)
    onehot_masked = jnp.where(ids[:, :, None] == v_iota,
                              mask[:, :, None], 0.0)                  # [B,S,V]
    cnt = jnp.sum(onehot_masked, axis=1)                              # [B,V]

    denom = jnp.maximum(jnp.sum(mask, axis=1, keepdims=True), 1.0)    # [B,1]

    # MXU path: fold the head into the embedding combine.
    #   logits = ((cnt @ table) / denom) @ w + b
    #          =  (cnt @ (table @ w)) / denom + b        (row scale commutes)
    table_w = jnp.dot(table_ref[...], w_ref[...],
                      preferred_element_type=jnp.float32)             # [V,C]
    logits = (jnp.dot(cnt, table_w, preferred_element_type=jnp.float32)
              / denom) + b_ref[...]                                   # [B,C]

    # ---- softmax(dim=1) + log-probs (exact divide: values leave the kernel) --
    mx = jnp.max(logits, axis=1, keepdims=True)                       # [B,1]
    e = jnp.exp(logits - mx)
    z = jnp.sum(e, axis=1, keepdims=True)
    softmax = e / z                                                   # [B,C]
    log_probs = (logits - mx) - jnp.log(z)                            # [B,C]

    # ---- per-example quantities ----
    c_iota = jax.lax.broadcasted_iota(jnp.int32, (B, C), 1)
    label_oh = (labels == c_iota).astype(jnp.float32)                 # [B,C]
    nll = -jnp.sum(label_oh * log_probs, axis=1, keepdims=True)       # [B,1]

    # argmax(dim=1) (first max, like torch.argmax)
    is_max = logits >= mx
    pred = jnp.min(jnp.where(is_max, c_iota, C), axis=1, keepdims=True)  # [B,1]
    pred_f32 = pred.astype(jnp.float32)
    correct = (pred == labels).astype(jnp.float32)                    # [B,1]

    # binary F1 indicators (sklearn default pos_label=1)
    pred_pos = pred == 1
    label_pos = labels == 1
    tp_i = jnp.logical_and(pred_pos, label_pos).astype(jnp.float32)
    fp_i = jnp.logical_and(pred_pos, jnp.logical_not(label_pos)
                           ).astype(jnp.float32)
    fn_i = jnp.logical_and(jnp.logical_not(pred_pos), label_pos
                           ).astype(jnp.float32)

    # ---- ONE merged batch-axis reduction for all five scalars ----
    red_in = jnp.concatenate([nll, correct, tp_i, fp_i, fn_i], axis=1)  # [B,5]
    red = jnp.sum(red_in, axis=0, keepdims=True)                        # [1,5]
    loss = red[:, 0:1] * (1.0 / B)                                      # [1,1]
    corrects = red[:, 1:2]                                              # [1,1]
    tp, fp, fn = red[:, 2:3], red[:, 3:4], red[:, 4:5]
    f1_den = 2.0 * tp + fp + fn
    f1 = jnp.where(f1_den > 0.0, 2.0 * tp / jnp.maximum(f1_den, 1.0),
                   jnp.zeros_like(f1_den))                              # [1,1]

    # ---- pack into one lane-dense [B, 128] slab: per-example pieces are one
    # concatenate + zero pad; the 3 scalar columns are injected with a single
    # nested where against a lane iota.  One unmasked full-width store. ----
    base = jnp.concatenate(
        [logits, softmax, pred_f32, correct,
         jnp.zeros((B, LANES - PER_EXAMPLE_COLS), jnp.float32)],
        axis=1)                                                         # [B,128]
    lane = jax.lax.broadcasted_iota(jnp.int32, (B, LANES), 1)
    slab = jnp.where(lane == LOSS_COL, loss,
           jnp.where(lane == CORRECTS_COL, corrects,
           jnp.where(lane == F1_COL, f1, base)))
    out_ref[...] = slab


@jax.jit
def train_operation(input_ids, attention_mask, labels, embed_table, w, b):
    # No wrapper-side gather / one-hot: raw ints go straight into the kernel.
    vmem = pl.BlockSpec(memory_space=pltpu.MemorySpace.VMEM)
    slab = pl.pallas_call(
        train_op_kernel,
        out_shape=jax.ShapeDtypeStruct((B, LANES), jnp.float32),
        in_specs=[vmem] * 6,
        out_specs=vmem,
    )(input_ids.astype(jnp.int32),
      attention_mask.astype(jnp.int32),
      labels.astype(jnp.int32).reshape(B, 1),
      embed_table.astype(jnp.float32),
      w.astype(jnp.float32),
      b.astype(jnp.float32))

    # Slice the packed slab apart (cheap slice ops in the wrapper).
    logits = slab[:, LOGITS_OFF:LOGITS_OFF + C]
    softmax_output = slab[:, SOFTMAX_OFF:SOFTMAX_OFF + C]
    output_max = slab[:, PRED_COL].astype(jnp.int32)        # argmax indices
    is_correct = slab[:, ISCORRECT_COL].astype(jnp.int32)   # per-example 0/1
    temp_loss = slab[0, LOSS_COL]
    temp_corrects = slab[0, CORRECTS_COL].astype(jnp.int32)
    temp_f1 = slab[0, F1_COL]
    return (temp_corrects, temp_loss, temp_f1, softmax_output, is_correct,
            output_max, logits)


if __name__ == "__main__":
    key = jax.random.PRNGKey(0)
    k1, k2, k3, k4, k5 = jax.random.split(key, 5)

    input_ids = jax.random.randint(k1, (B, S), 0, V, dtype=jnp.int32)
    attention_mask = (jax.random.uniform(k2, (B, S)) > 0.2).astype(jnp.int32)
    labels = jax.random.randint(k3, (B,), 0, C, dtype=jnp.int32)  # in [0, C)

    # Deterministic synthetic "model" parameters
    embed_table = 0.1 * jax.random.normal(k4, (V, H), dtype=jnp.float32)
    w = 0.1 * jax.random.normal(k5, (H, C), dtype=jnp.float32)
    b = jnp.zeros((1, C), dtype=jnp.float32)

    outs = train_operation(input_ids, attention_mask, labels, embed_table, w, b)
    jax.block_until_ready(outs)

    (corrects, loss, f1, softmax_out, is_correct, output_max, logits) = outs
    assert logits.shape == (B, C) and softmax_out.shape == (B, C)
    assert output_max.shape == (B,) and is_correct.shape == (B,)
    assert loss.shape == () and corrects.shape == () and f1.shape == ()
    # softmax rows sum to ~1 (exact divide now -> tight tolerance)
    row_sums = jnp.sum(softmax_out, axis=1)
    assert bool(jnp.all(jnp.abs(row_sums - 1.0) < 1e-5))
    # corrects is consistent with the per-example flags
    assert int(corrects) == int(jnp.sum(is_correct))
    assert 0 <= int(corrects) <= B
    assert bool(loss > 0.0) and 0.0 <= float(f1) <= 1.0
    print("KERNEL_OK")
</pallas_src>

<mosaic_0001>
module attributes {stable_mosaic.version = 11 : i64} {
  func.func @train_op_kernel(%arg0: memref<8x8xi32, #tpu.memory_space<vmem>>, %arg1: memref<8x8xi32, #tpu.memory_space<vmem>>, %arg2: memref<8x1xi32, #tpu.memory_space<vmem>>, %arg3: memref<32x32xf32, #tpu.memory_space<vmem>>, %arg4: memref<32x2xf32, #tpu.memory_space<vmem>>, %arg5: memref<1x2xf32, #tpu.memory_space<vmem>>, %arg6: memref<8x128xf32, #tpu.memory_space<vmem>>) attributes {dimension_semantics = [], scalar_prefetch = 0 : i64, scratch_operands = 0 : i64, tpu.core_type = #tpu.core_type<tc>} {
    %c0 = arith.constant 0 : index
    %c0_0 = arith.constant 0 : index
    %0 = vector.load %arg0[%c0, %c0_0] : memref<8x8xi32, #tpu.memory_space<vmem>>, vector<8x8xi32>
    %c0_1 = arith.constant 0 : index
    %c0_2 = arith.constant 0 : index
    %1 = vector.load %arg1[%c0_1, %c0_2] : memref<8x8xi32, #tpu.memory_space<vmem>>, vector<8x8xi32>
    %2 = arith.sitofp %1 : vector<8x8xi32> to vector<8x8xf32>
    %c0_3 = arith.constant 0 : index
    %c0_4 = arith.constant 0 : index
    %3 = vector.load %arg2[%c0_3, %c0_4] : memref<8x1xi32, #tpu.memory_space<vmem>>, vector<8x1xi32>
    %4 = tpu.iota {dimensions = array<i32: 2>} : vector<8x8x32xi32>
    %5 = vector.shape_cast %0 : vector<8x8xi32> to vector<8x8x1xi32>
    %6 = vector.broadcast %5 : vector<8x8x1xi32> to vector<8x8x32xi32>
    %7 = arith.cmpi eq, %6, %4 : vector<8x8x32xi32>
    %8 = vector.shape_cast %2 : vector<8x8xf32> to vector<8x8x1xf32>
    %cst = arith.constant 0.000000e+00 : f32
    %9 = vector.shape_cast %8 : vector<8x8x1xf32> to vector<8x8x1xf32>
    %10 = vector.broadcast %9 : vector<8x8x1xf32> to vector<8x8x32xf32>
    %11 = vector.broadcast %cst : f32 to vector<8x8x32xf32>
    %12 = arith.select %7, %10, %11 : vector<8x8x32xi1>, vector<8x8x32xf32>
    %cst_5 = arith.constant dense<0.000000e+00> : vector<8x32xf32>
    %13 = vector.multi_reduction <add>, %12, %cst_5 [1] : vector<8x8x32xf32> to vector<8x32xf32>
    %cst_6 = arith.constant dense<0.000000e+00> : vector<8xf32>
    %14 = vector.multi_reduction <add>, %2, %cst_6 [1] : vector<8x8xf32> to vector<8xf32>
    %15 = vector.shape_cast %14 : vector<8xf32> to vector<8x1xf32>
    %cst_7 = arith.constant 1.000000e+00 : f32
    %16 = vector.broadcast %cst_7 : f32 to vector<8x1xf32>
    %17 = arith.maximumf %15, %16 : vector<8x1xf32>
    %c0_8 = arith.constant 0 : index
    %c0_9 = arith.constant 0 : index
    %18 = vector.load %arg3[%c0_8, %c0_9] : memref<32x32xf32, #tpu.memory_space<vmem>>, vector<32x32xf32>
    %c0_10 = arith.constant 0 : index
    %c0_11 = arith.constant 0 : index
    %19 = vector.load %arg4[%c0_10, %c0_11] : memref<32x2xf32, #tpu.memory_space<vmem>>, vector<32x2xf32>
    %cst_12 = arith.constant dense<0.000000e+00> : vector<32x2xf32>
    %20 = tpu.matmul %18, %19, %cst_12 {dimension_numbers = #tpu.dot_dimension_numbers<[1], [0], [0], [1], [0, 0, 1, 1], [], []>} : vector<32x32xf32>, vector<32x2xf32>, vector<32x2xf32> -> vector<32x2xf32>
    %cst_13 = arith.constant dense<0.000000e+00> : vector<8x2xf32>
    %21 = tpu.matmul %13, %20, %cst_13 {dimension_numbers = #tpu.dot_dimension_numbers<[1], [0], [0], [1], [0, 0, 1, 1], [], []>} : vector<8x32xf32>, vector<32x2xf32>, vector<8x2xf32> -> vector<8x2xf32>
    %22 = vector.broadcast %17 : vector<8x1xf32> to vector<8x2xf32>
    %23 = arith.divf %21, %22 : vector<8x2xf32>
    %c0_14 = arith.constant 0 : index
    %c0_15 = arith.constant 0 : index
    %24 = vector.load %arg5[%c0_14, %c0_15] : memref<1x2xf32, #tpu.memory_space<vmem>>, vector<1x2xf32>
    %25 = vector.broadcast %24 : vector<1x2xf32> to vector<8x2xf32>
    %26 = arith.addf %23, %25 : vector<8x2xf32>
    %cst_16 = arith.constant dense<0xFF800000> : vector<8xf32>
    %27 = vector.multi_reduction <maximumf>, %26, %cst_16 [1] : vector<8x2xf32> to vector<8xf32>
    %28 = vector.shape_cast %27 : vector<8xf32> to vector<8x1xf32>
    %29 = vector.broadcast %28 : vector<8x1xf32> to vector<8x2xf32>
    %30 = arith.subf %26, %29 : vector<8x2xf32>
    %31 = math.exp %30 : vector<8x2xf32>
    %cst_17 = arith.constant dense<0.000000e+00> : vector<8xf32>
    %32 = vector.multi_reduction <add>, %31, %cst_17 [1] : vector<8x2xf32> to vector<8xf32>
    %33 = vector.shape_cast %32 : vector<8xf32> to vector<8x1xf32>
    %34 = vector.broadcast %33 : vector<8x1xf32> to vector<8x2xf32>
    %35 = arith.divf %31, %34 : vector<8x2xf32>
    %36 = vector.broadcast %28 : vector<8x1xf32> to vector<8x2xf32>
    %37 = arith.subf %26, %36 : vector<8x2xf32>
    %38 = math.log %33 : vector<8x1xf32>
    %39 = vector.broadcast %38 : vector<8x1xf32> to vector<8x2xf32>
    %40 = arith.subf %37, %39 : vector<8x2xf32>
    %41 = tpu.iota {dimensions = array<i32: 1>} : vector<8x2xi32>
    %42 = vector.broadcast %3 : vector<8x1xi32> to vector<8x2xi32>
    %43 = arith.cmpi eq, %42, %41 : vector<8x2xi32>
    %44 = arith.extui %43 : vector<8x2xi1> to vector<8x2xi32>
    %45 = arith.sitofp %44 : vector<8x2xi32> to vector<8x2xf32>
    %46 = arith.mulf %45, %40 : vector<8x2xf32>
    %cst_18 = arith.constant dense<0.000000e+00> : vector<8xf32>
    %47 = vector.multi_reduction <add>, %46, %cst_18 [1] : vector<8x2xf32> to vector<8xf32>
    %48 = vector.shape_cast %47 : vector<8xf32> to vector<8x1xf32>
    %cst_19 = arith.constant 0.000000e+00 : f32
    %49 = vector.broadcast %cst_19 : f32 to vector<8x1xf32>
    %50 = arith.subf %49, %48 : vector<8x1xf32>
    %51 = vector.broadcast %28 : vector<8x1xf32> to vector<8x2xf32>
    %52 = arith.cmpf oge, %26, %51 : vector<8x2xf32>
    %c2_i32 = arith.constant 2 : i32
    %53 = vector.broadcast %c2_i32 : i32 to vector<8x2xi32>
    %54 = arith.select %52, %41, %53 : vector<8x2xi1>, vector<8x2xi32>
    %cst_20 = arith.constant dense<2147483647> : vector<8xi32>
    %55 = vector.multi_reduction <minsi>, %54, %cst_20 [1] : vector<8x2xi32> to vector<8xi32>
    %56 = vector.shape_cast %55 : vector<8xi32> to vector<8x1xi32>
    %57 = arith.sitofp %56 : vector<8x1xi32> to vector<8x1xf32>
    %58 = arith.cmpi eq, %56, %3 : vector<8x1xi32>
    %59 = arith.extui %58 : vector<8x1xi1> to vector<8x1xi32>
    %60 = arith.sitofp %59 : vector<8x1xi32> to vector<8x1xf32>
    %c1_i32 = arith.constant 1 : i32
    %61 = vector.broadcast %c1_i32 : i32 to vector<8x1xi32>
    %62 = arith.cmpi eq, %56, %61 : vector<8x1xi32>
    %c1_i32_21 = arith.constant 1 : i32
    %63 = vector.broadcast %c1_i32_21 : i32 to vector<8x1xi32>
    %64 = arith.cmpi eq, %3, %63 : vector<8x1xi32>
    %65 = arith.andi %62, %64 : vector<8x1xi1>
    %66 = arith.extui %65 : vector<8x1xi1> to vector<8x1xi32>
    %67 = arith.sitofp %66 : vector<8x1xi32> to vector<8x1xf32>
    %cst_22 = arith.constant dense<true> : vector<8x1xi1>
    %68 = arith.xori %64, %cst_22 : vector<8x1xi1>
    %69 = arith.andi %62, %68 : vector<8x1xi1>
    %70 = arith.extui %69 : vector<8x1xi1> to vector<8x1xi32>
    %71 = arith.sitofp %70 : vector<8x1xi32> to vector<8x1xf32>
    %cst_23 = arith.constant dense<true> : vector<8x1xi1>
    %72 = arith.xori %62, %cst_23 : vector<8x1xi1>
    %73 = arith.andi %72, %64 : vector<8x1xi1>
    %74 = arith.extui %73 : vector<8x1xi1> to vector<8x1xi32>
    %75 = arith.sitofp %74 : vector<8x1xi32> to vector<8x1xf32>
    %76 = tpu.concatenate %50, %60, %67, %71, %75 in 1 : vector<8x1xf32>, vector<8x1xf32>, vector<8x1xf32>, vector<8x1xf32>, vector<8x1xf32> -> vector<8x5xf32>
    %cst_24 = arith.constant dense<0.000000e+00> : vector<5xf32>
    %77 = vector.multi_reduction <add>, %76, %cst_24 [0] : vector<8x5xf32> to vector<5xf32>
    %78 = vector.shape_cast %77 : vector<5xf32> to vector<1x5xf32>
    %79 = vector.extract_strided_slice %78 {offsets = [0, 0], sizes = [1, 1], strides = [1, 1]} : vector<1x5xf32> to vector<1x1xf32>
    %cst_25 = arith.constant 1.250000e-01 : f32
    %80 = vector.broadcast %cst_25 : f32 to vector<1x1xf32>
    %81 = arith.mulf %79, %80 : vector<1x1xf32>
    %82 = vector.extract_strided_slice %78 {offsets = [0, 1], sizes = [1, 1], strides = [1, 1]} : vector<1x5xf32> to vector<1x1xf32>
    %83 = vector.extract_strided_slice %78 {offsets = [0, 2], sizes = [1, 1], strides = [1, 1]} : vector<1x5xf32> to vector<1x1xf32>
    %84 = vector.extract_strided_slice %78 {offsets = [0, 3], sizes = [1, 1], strides = [1, 1]} : vector<1x5xf32> to vector<1x1xf32>
    %85 = vector.extract_strided_slice %78 {offsets = [0, 4], sizes = [1, 1], strides = [1, 1]} : vector<1x5xf32> to vector<1x1xf32>
    %cst_26 = arith.constant 2.000000e+00 : f32
    %86 = vector.broadcast %cst_26 : f32 to vector<1x1xf32>
    %87 = arith.mulf %86, %83 : vector<1x1xf32>
    %88 = arith.addf %87, %84 : vector<1x1xf32>
    %89 = arith.addf %88, %85 : vector<1x1xf32>
    %cst_27 = arith.constant 0.000000e+00 : f32
    %90 = vector.broadcast %cst_27 : f32 to vector<1x1xf32>
    %91 = arith.cmpf ogt, %89, %90 : vector<1x1xf32>
    %cst_28 = arith.constant 2.000000e+00 : f32
    %92 = vector.broadcast %cst_28 : f32 to vector<1x1xf32>
    %93 = arith.mulf %92, %83 : vector<1x1xf32>
    %cst_29 = arith.constant 1.000000e+00 : f32
    %94 = vector.broadcast %cst_29 : f32 to vector<1x1xf32>
    %95 = arith.maximumf %89, %94 : vector<1x1xf32>
    %96 = arith.divf %93, %95 : vector<1x1xf32>
    %cst_30 = arith.constant 0.000000e+00 : f32
    %97 = vector.broadcast %cst_30 : f32 to vector<1x1xf32>
    %98 = arith.select %91, %96, %97 : vector<1x1xi1>, vector<1x1xf32>
    %cst_31 = arith.constant 0.000000e+00 : f32
    %99 = vector.broadcast %cst_31 : f32 to vector<8x122xf32>
    %100 = tpu.concatenate %26, %35, %57, %60, %99 in 1 : vector<8x2xf32>, vector<8x2xf32>, vector<8x1xf32>, vector<8x1xf32>, vector<8x122xf32> -> vector<8x128xf32>
    %101 = tpu.iota {dimensions = array<i32: 1>} : vector<8x128xi32>
    %c6_i32 = arith.constant 6 : i32
    %102 = vector.broadcast %c6_i32 : i32 to vector<8x128xi32>
    %103 = arith.cmpi eq, %101, %102 : vector<8x128xi32>
    %c7_i32 = arith.constant 7 : i32
    %104 = vector.broadcast %c7_i32 : i32 to vector<8x128xi32>
    %105 = arith.cmpi eq, %101, %104 : vector<8x128xi32>
    %c8_i32 = arith.constant 8 : i32
    %106 = vector.broadcast %c8_i32 : i32 to vector<8x128xi32>
    %107 = arith.cmpi eq, %101, %106 : vector<8x128xi32>
    %108 = vector.shape_cast %98 : vector<1x1xf32> to vector<1x1xf32>
    %109 = vector.broadcast %108 : vector<1x1xf32> to vector<8x128xf32>
    %110 = arith.select %107, %109, %100 : vector<8x128xi1>, vector<8x128xf32>
    %111 = vector.shape_cast %82 : vector<1x1xf32> to vector<1x1xf32>
    %112 = vector.broadcast %111 : vector<1x1xf32> to vector<8x128xf32>
    %113 = arith.select %105, %112, %110 : vector<8x128xi1>, vector<8x128xf32>
    %114 = vector.shape_cast %81 : vector<1x1xf32> to vector<1x1xf32>
    %115 = vector.broadcast %114 : vector<1x1xf32> to vector<8x128xf32>
    %116 = arith.select %103, %115, %113 : vector<8x128xi1>, vector<8x128xf32>
    %c0_32 = arith.constant 0 : index
    %c0_33 = arith.constant 0 : index
    %117 = vector.load %arg6[%c0_32, %c0_33] : memref<8x128xf32, #tpu.memory_space<vmem>>, vector<8x128xf32>
    tpu.vector_store %arg6[%c0_32, %c0_33], %116 {strides = array<i32>} : memref<8x128xf32, #tpu.memory_space<vmem>>, vector<8x128xf32>,
    return
  }
}

</mosaic_0001>

<llo_original>
// kernel: train_operation.1
$region0: #{train_operation.1}
  #allocation0 [shape = 'u32[]', space=smem, size = 0x4, offset = 0x4, fixed_abs, tag = 'smem constant byte address 0x4 - core index']
  #allocation1 [shape = 'u32[144,128]{1,0:T(1,128)}', space=vmem, size = 0x12000, scoped, tag = 'internal scratch']
  %s0 = inlined_call_operand.vmem [shape: s32[8,8], index: 0, kind: input, shape index: {}]
  %s1 = inlined_call_operand.vmem [shape: s32[8,8], index: 1, kind: input, shape index: {}]
  %s2 = inlined_call_operand.vmem [shape: s32[8,1], index: 2, kind: input, shape index: {}]
  %s3 = inlined_call_operand.vmem [shape: f32[32,32], index: 3, kind: input, shape index: {}]
  %s4 = inlined_call_operand.vmem [shape: f32[32,2], index: 4, kind: input, shape index: {}]
  %s5 = inlined_call_operand.vmem [shape: f32[1,2], index: 5, kind: input, shape index: {}]
  %s6 = inlined_call_operand.vmem [shape: f32[8,128], index: 6, kind: output, shape index: {}]
  %s7 = sld [smem:[#allocation0]]
  $region34: #{train_operation.1} parent=0
    _
  %s9 = ssub.s32 1, %s7
  %s10 = scalar_select 0, %s9, %s7
  // Predicated region
  $region2: #{train_operation.1} parent=0 // pred_check
    _
  $region3: #{train_operation.1} parent=0 // pred_check_branch
    %12 = sbr.rel (0) target = $region5
  $region4: #{train_operation.1} parent=0 // pred_region
    _
  $region5: #{train_operation.1} parent=0 // pred_fallthru
    _
  // Predicated region
  $region6: #{train_operation.1} parent=0 // pred_check
    _
  $region7: #{train_operation.1} parent=0 // pred_check_branch
    %14 = sbr.rel (0) target = $region9
  $region8: #{train_operation.1} parent=0 // pred_region
    _
  $region9: #{train_operation.1} parent=0 // pred_fallthru
    _
  // Predicated region
  $region10: #{train_operation.1} parent=0 // pred_check
    _
  $region11: #{train_operation.1} parent=0 // pred_check_branch
    %16 = sbr.rel (0) target = $region13
  $region12: #{train_operation.1} parent=0 // pred_region
    _
  $region13: #{train_operation.1} parent=0 // pred_fallthru
    _
  // Predicated region
  $region14: #{train_operation.1} parent=0 // pred_check
    _
  $region15: #{train_operation.1} parent=0 // pred_check_branch
    %18 = sbr.rel (0) target = $region17
  $region16: #{train_operation.1} parent=0 // pred_region
    _
  $region17: #{train_operation.1} parent=0 // pred_fallthru
    _
  // Predicated region
  $region18: #{train_operation.1} parent=0 // pred_check
    _
  $region19: #{train_operation.1} parent=0 // pred_check_branch
    %20 = sbr.rel (0) target = $region21
  $region20: #{train_operation.1} parent=0 // pred_region
    _
  $region21: #{train_operation.1} parent=0 // pred_fallthru
    _
  // Predicated region
  $region22: #{train_operation.1} parent=0 // pred_check
    _
  $region23: #{train_operation.1} parent=0 // pred_check_branch
    %22 = sbr.rel (0) target = $region25
  $region24: #{train_operation.1} parent=0 // pred_region
    _
  $region25: #{train_operation.1} parent=0 // pred_fallthru
    _
  %v23 = vld [vmem:[%s0] sm:$0xff]
  %v24 = vld [vmem:[%s1] sm:$0xff]
  %v25 = vcvt.s32.f32 %v24
  %v26 = vld [vmem:[%s2] sm:$0xff]
  %v27 = vlaneseq
  %v28 = vand.u32 %v27, 127
  %v29 = vlaneseq
  %v30 = vshrl.u32 %v29, 7
  %v31 = vsub.s32 0, %v30
  %v32 = vrot.slane %v23, %v31
  %34 = vbcast.lane.b32.xlu0 %v32, 256
  %v35 = vpop.permute.xlu0 %34
  %v36 = vlaneseq
  %v37 = vshrl.u32 %v36, 7
  %v38 = vsub.s32 1, %v37
  %v39 = vrot.slane %v23, %v38
  %41 = vbcast.lane.b32.xlu0 %v39, 256
  %v42 = vpop.permute.xlu0 %41
  %v43 = vlaneseq
  %v44 = vshrl.u32 %v43, 7
  %v45 = vsub.s32 2, %v44
  %v46 = vrot.slane %v23, %v45
  %48 = vbcast.lane.b32.xlu0 %v46, 256
  %v49 = vpop.permute.xlu0 %48
  %v50 = vlaneseq
  %v51 = vshrl.u32 %v50, 7
  %v52 = vsub.s32 3, %v51
  %v53 = vrot.slane %v23, %v52
  %55 = vbcast.lane.b32.xlu0 %v53, 256
  %v56 = vpop.permute.xlu0 %55
  %v57 = vlaneseq
  %v58 = vshrl.u32 %v57, 7
  %v59 = vsub.s32 4, %v58
  %v60 = vrot.slane %v23, %v59
  %62 = vbcast.lane.b32.xlu0 %v60, 256
  %v63 = vpop.permute.xlu0 %62
  %v64 = vlaneseq
  %v65 = vshrl.u32 %v64, 7
  %v66 = vsub.s32 5, %v65
  %v67 = vrot.slane %v23, %v66
  %69 = vbcast.lane.b32.xlu0 %v67, 256
  %v70 = vpop.permute.xlu0 %69
  %v71 = vlaneseq
  %v72 = vshrl.u32 %v71, 7
  %v73 = vsub.s32 6, %v72
  %v74 = vrot.slane %v23, %v73
  %76 = vbcast.lane.b32.xlu0 %v74, 256
  %v77 = vpop.permute.xlu0 %76
  %v78 = vlaneseq
  %v79 = vshrl.u32 %v78, 7
  %v80 = vsub.s32 7, %v79
  %v81 = vrot.slane %v23, %v80
  %83 = vbcast.lane.b32.xlu0 %v81, 256
  %v84 = vpop.permute.xlu0 %83
  %vm85 = vcmp.eq.s32.totalorder %v35, %v28
  %vm86 = vcmp.eq.s32.totalorder %v42, %v28
  %vm87 = vcmp.eq.s32.totalorder %v49, %v28
  %vm88 = vcmp.eq.s32.totalorder %v56, %v28
  %vm89 = vcmp.eq.s32.totalorder %v63, %v28
  %vm90 = vcmp.eq.s32.totalorder %v70, %v28
  %vm91 = vcmp.eq.s32.totalorder %v77, %v28
  %vm92 = vcmp.eq.s32.totalorder %v84, %v28
  %v93 = vlaneseq
  %v94 = vshrl.u32 %v93, 7
  %v95 = vsub.s32 0, %v94
  %v96 = vrot.slane %v25, %v95
  %98 = vbcast.lane.b32.xlu0 %v96, 256
  %v99 = vpop.permute.xlu0 %98
  %v100 = vlaneseq
  %v101 = vshrl.u32 %v100, 7
  %v102 = vsub.s32 1, %v101
  %v103 = vrot.slane %v25, %v102
  %105 = vbcast.lane.b32.xlu0 %v103, 256
  %v106 = vpop.permute.xlu0 %105
  %v107 = vlaneseq
  %v108 = vshrl.u32 %v107, 7
  %v109 = vsub.s32 2, %v108
  %v110 = vrot.slane %v25, %v109
  %112 = vbcast.lane.b32.xlu0 %v110, 256
  %v113 = vpop.permute.xlu0 %112
  %v114 = vlaneseq
  %v115 = vshrl.u32 %v114, 7
  %v116 = vsub.s32 3, %v115
  %v117 = vrot.slane %v25, %v116
  %119 = vbcast.lane.b32.xlu0 %v117, 256
  %v120 = vpop.permute.xlu0 %119
  %v121 = vlaneseq
  %v122 = vshrl.u32 %v121, 7
  %v123 = vsub.s32 4, %v122
  %v124 = vrot.slane %v25, %v123
  %126 = vbcast.lane.b32.xlu0 %v124, 256
  %v127 = vpop.permute.xlu0 %126
  %v128 = vlaneseq
  %v129 = vshrl.u32 %v128, 7
  %v130 = vsub.s32 5, %v129
  %v131 = vrot.slane %v25, %v130
  %133 = vbcast.lane.b32.xlu0 %v131, 256
  %v134 = vpop.permute.xlu0 %133
  %v135 = vlaneseq
  %v136 = vshrl.u32 %v135, 7
  %v137 = vsub.s32 6, %v136
  %v138 = vrot.slane %v25, %v137
  %140 = vbcast.lane.b32.xlu0 %v138, 256
  %v141 = vpop.permute.xlu0 %140
  %v142 = vlaneseq
  %v143 = vshrl.u32 %v142, 7
  %v144 = vsub.s32 7, %v143
  %v145 = vrot.slane %v25, %v144
  %147 = vbcast.lane.b32.xlu0 %v145, 256
  %v148 = vpop.permute.xlu0 %147
  %v149 = vsel %vm85, %v99, 0.0
  %v150 = vsel %vm86, %v106, 0.0
  %v151 = vsel %vm87, %v113, 0.0
  %v152 = vsel %vm88, %v120, 0.0
  %v153 = vsel %vm89, %v127, 0.0
  %v154 = vsel %vm90, %v134, 0.0
  %v155 = vsel %vm91, %v141, 0.0
  %v156 = vsel %vm92, %v148, 0.0
  %vm157 = vcmask 261120
  %v158 = vsel %vm157, %v149, 0.0
  %v159 = vrot.slane %v158, 4
  %v160 = vadd.f32 %v158, %v159
  %v161 = vrot.slane %v160, 2
  %v162 = vadd.f32 %v160, %v161
  %v163 = vrot.slane %v162, 1
  %v164 = vadd.f32 %v162, %v163
  %v165 = vsel %vm157, %v150, 0.0
  %v166 = vrot.slane %v165, 4
  %v167 = vadd.f32 %v165, %v166
  %v168 = vrot.slane %v167, 2
  %v169 = vadd.f32 %v167, %v168
  %v170 = vrot.slane %v169, 1
  %v171 = vadd.f32 %v169, %v170
  %v172 = vsel %vm157, %v151, 0.0
  %v173 = vrot.slane %v172, 4
  %v174 = vadd.f32 %v172, %v173
  %v175 = vrot.slane %v174, 2
  %v176 = vadd.f32 %v174, %v175
  %v177 = vrot.slane %v176, 1
  %v178 = vadd.f32 %v176, %v177
  %v179 = vsel %vm157, %v152, 0.0
  %v180 = vrot.slane %v179, 4
  %v181 = vadd.f32 %v179, %v180
  %v182 = vrot.slane %v181, 2
  %v183 = vadd.f32 %v181, %v182
  %v184 = vrot.slane %v183, 1
  %v185 = vadd.f32 %v183, %v184
  %v186 = vsel %vm157, %v153, 0.0
  %v187 = vrot.slane %v186, 4
  %v188 = vadd.f32 %v186, %v187
  %v189 = vrot.slane %v188, 2
  %v190 = vadd.f32 %v188, %v189
  %v191 = vrot.slane %v190, 1
  %v192 = vadd.f32 %v190, %v191
  %v193 = vsel %vm157, %v154, 0.0
  %v194 = vrot.slane %v193, 4
  %v195 = vadd.f32 %v193, %v194
  %v196 = vrot.slane %v195, 2
  %v197 = vadd.f32 %v195, %v196
  %v198 = vrot.slane %v197, 1
  %v199 = vadd.f32 %v197, %v198
  %v200 = vsel %vm157, %v155, 0.0
  %v201 = vrot.slane %v200, 4
  %v202 = vadd.f32 %v200, %v201
  %v203 = vrot.slane %v202, 2
  %v204 = vadd.f32 %v202, %v203
  %v205 = vrot.slane %v204, 1
  %v206 = vadd.f32 %v204, %v205
  %v207 = vsel %vm157, %v156, 0.0
  %v208 = vrot.slane %v207, 4
  %v209 = vadd.f32 %v207, %v208
  %v210 = vrot.slane %v209, 2
  %v211 = vadd.f32 %v209, %v210
  %v212 = vrot.slane %v211, 1
  %v213 = vadd.f32 %v211, %v212
  %vm214 = vcmask 64512
  %v215 = vsel %vm214, %v25, 0.0
  %216 = vadd.xlane.f32.xlu0 %v215
  %v217 = vpop.xlane.xlu0 %216
  %v218 = vmax.f32 %v217, 1.0
  %v219 = vld [vmem:[%s3] sm:$0xff]
  %v220 = vld [vmem:[%s3 + $0x8] sm:$0xff]
  %v221 = vld [vmem:[%s3 + $0x10] sm:$0xff]
  %v222 = vld [vmem:[%s3 + $0x18] sm:$0xff]
  %v223 = vld [vmem:[%s4] sm:$0xff]
  %v224 = vld [vmem:[%s4 + $0x8] sm:$0xff]
  %v225 = vld [vmem:[%s4 + $0x10] sm:$0xff]
  %v226 = vld [vmem:[%s4 + $0x18] sm:$0xff]
  %v228 = vsel %vm157, %v219, 0
  %v231 = vsel %vm157, %v220, 0
  %v234 = vsel %vm157, %v221, 0
  %v237 = vsel %vm157, %v222, 0
  %239 = vmatprep.subr.mxu0 0.0
  %240 = vmatpush1.msra.mxu0 %v223
  %241 = vmatprep.subr.mxu0 0.0
  %242 = vmatpush1.msra.mxu0 %v224
  %243 = vmatprep.subr.mxu0 0.0
  %244 = vmatpush1.msra.mxu0 %v225
  %245 = vmatprep.subr.mxu0 0.0
  %246 = vmatpush1.msra.mxu0 %v226
  %247 = vmatprep.subr.mxu0 0.0
  %248 = vmatpush1.msra.mxu0 0.0
  %249 = vmatprep.subr.mxu0 0.0
  %250 = vmatpush1.msra.mxu0 0.0
  %251 = vmatprep.subr.mxu0 0.0
  %252 = vmatpush1.msra.mxu0 0.0
  %253 = vmatprep.subr.mxu0 0.0
  %254 = vmatpush1.msra.mxu0 0.0
  %255 = vmatprep.subr.mxu0 0.0
  %256 = vmatpush1.msra.mxu0 0.0
  %257 = vmatprep.subr.mxu0 0.0
  %258 = vmatpush1.msra.mxu0 0.0
  %259 = vmatprep.subr.mxu0 0.0
  %260 = vmatpush1.msra.mxu0 0.0
  %261 = vmatprep.subr.mxu0 0.0
  %262 = vmatpush1.msra.mxu0 0.0
  %263 = vmatprep.subr.mxu0 0.0
  %264 = vmatpush1.msra.mxu0 0.0
  %265 = vmatprep.subr.mxu0 0.0
  %266 = vmatpush1.msra.mxu0 0.0
  %267 = vmatprep.subr.mxu0 0.0
  %268 = vmatpush1.msra.mxu0 0.0
  %269 = vmatprep.subr.mxu0 0.0
  %270 = vmatpush1.msra.mxu0 0.0
  %271 = vmatprep.subr.mxu0 0.0
  %272 = vmatpush1.msra.mxu0 0.0
  %273 = vmatprep.subr.mxu0 0.0
  %274 = vmatpush1.msra.mxu0 0.0
  %275 = vmatprep.subr.mxu0 0.0
  %276 = vmatpush1.msra.mxu0 0.0
  %277 = vmatprep.subr.mxu0 0.0
  %278 = vmatpush1.msra.mxu0 0.0
  %279 = vmatprep.subr.mxu0 0.0
  %280 = vmatpush1.msra.mxu0 0.0
  %281 = vmatprep.subr.mxu0 0.0
  %282 = vmatpush1.msra.mxu0 0.0
  %283 = vmatprep.subr.mxu0 0.0
  %284 = vmatpush1.msra.mxu0 0.0
  %285 = vmatprep.subr.mxu0 0.0
  %286 = vmatpush1.msra.mxu0 0.0
  %287 = vmatprep.subr.mxu0 0.0
  %288 = vmatpush1.msra.mxu0 0.0
  %289 = vmatprep.subr.mxu0 0.0
  %290 = vmatpush1.msra.mxu0 0.0
  %291 = vmatprep.subr.mxu0 0.0
  %292 = vmatpush1.msra.mxu0 0.0
  %293 = vmatprep.subr.mxu0 0.0
  %294 = vmatpush1.msra.mxu0 0.0
  %295 = vmatprep.subr.mxu0 0.0
  %296 = vmatpush1.msra.mxu0 0.0
  %297 = vmatprep.subr.mxu0 0.0
  %298 = vmatpush1.msra.mxu0 0.0
  %299 = vmatprep.subr.mxu0 0.0
  %300 = vmatpush1.msra.mxu0 0.0
  %301 = vmatprep.subr.mxu0 0.0
  %302 = vmatpush1.msra.mxu0 0.0
  %303 = vmatprep.mubr.f32.mxu0 0.0
  %304 = vmatmul.mubr.f32.gmra.mrb[0].mxu0 %v228
  %v305 = vpop.f32.mrb[0].mxu0
  %v306 = vadd.f32 0.0, %v305
  %v307 = vpop.f32.mrb[0].mxu0
  %308 = vmatprep.mubr.f32.mxu0 0.0
  %309 = vmatmul.mubr.f32.gmra.mrb[0].mxu0 %v231
  %v310 = vpop.f32.mrb[0].mxu0
  %v311 = vadd.f32 0.0, %v310
  %v312 = vpop.f32.mrb[0].mxu0
  %313 = vmatprep.mubr.f32.mxu0 0.0
  %314 = vmatmul.mubr.f32.gmra.mrb[0].mxu0 %v234
  %v315 = vpop.f32.mrb[0].mxu0
  %v316 = vadd.f32 0.0, %v315
  %v317 = vpop.f32.mrb[0].mxu0
  %318 = vmatprep.mubr.f32.mxu0 0.0
  %319 = vmatmul.mubr.f32.gmra.mrb[0].mxu0 %v237
  %v320 = vpop.f32.mrb[0].mxu0
  %v321 = vadd.f32 0.0, %v320
  %v322 = vpop.f32.mrb[0].mxu0
  %323 = vdwg.mxu0
  %vm332 = vcmask 1041409
  %v333 = vsel %vm332, %v171, %v164
  %vm334 = vcmask 1042434
  %v335 = vsel %vm334, %v178, %v333
  %vm336 = vcmask 1043459
  %v337 = vsel %vm336, %v185, %v335
  %vm338 = vcmask 1044484
  %v339 = vsel %vm338, %v192, %v337
  %vm340 = vcmask 1045509
  %v341 = vsel %vm340, %v199, %v339
  %vm342 = vcmask 1046534
  %v343 = vsel %vm342, %v206, %v341
  %vm344 = vcmask 1047559
  %v345 = vsel %vm344, %v213, %v343
  %v346 = vsel %vm157, %v345, 0
  %348 = vmatprep.subr.mxu0 0.0
  %349 = vmatpush1.msra.mxu0 %v306
  %350 = vmatprep.subr.mxu0 0.0
  %351 = vmatpush1.msra.mxu0 %v311
  %352 = vmatprep.subr.mxu0 0.0
  %353 = vmatpush1.msra.mxu0 %v316
  %354 = vmatprep.subr.mxu0 0.0
  %355 = vmatpush1.msra.mxu0 %v321
  %356 = vmatprep.subr.mxu0 0.0
  %357 = vmatpush1.msra.mxu0 0.0
  %358 = vmatprep.subr.mxu0 0.0
  %359 = vmatpush1.msra.mxu0 0.0
  %360 = vmatprep.subr.mxu0 0.0
  %361 = vmatpush1.msra.mxu0 0.0
  %362 = vmatprep.subr.mxu0 0.0
  %363 = vmatpush1.msra.mxu0 0.0
  %364 = vmatprep.subr.mxu0 0.0
  %365 = vmatpush1.msra.mxu0 0.0
  %366 = vmatprep.subr.mxu0 0.0
  %367 = vmatpush1.msra.mxu0 0.0
  %368 = vmatprep.subr.mxu0 0.0
  %369 = vmatpush1.msra.mxu0 0.0
  %370 = vmatprep.subr.mxu0 0.0
  %371 = vmatpush1.msra.mxu0 0.0
  %372 = vmatprep.subr.mxu0 0.0
  %373 = vmatpush1.msra.mxu0 0.0
  %374 = vmatprep.subr.mxu0 0.0
  %375 = vmatpush1.msra.mxu0 0.0
  %376 = vmatprep.subr.mxu0 0.0
  %377 = vmatpush1.msra.mxu0 0.0
  %378 = vmatprep.subr.mxu0 0.0
  %379 = vmatpush1.msra.mxu0 0.0
  %380 = vmatprep.subr.mxu0 0.0
  %381 = vmatpush1.msra.mxu0 0.0
  %382 = vmatprep.subr.mxu0 0.0
  %383 = vmatpush1.msra.mxu0 0.0
  %384 = vmatprep.subr.mxu0 0.0
  %385 = vmatpush1.msra.mxu0 0.0
  %386 = vmatprep.subr.mxu0 0.0
  %387 = vmatpush1.msra.mxu0 0.0
  %388 = vmatprep.subr.mxu0 0.0
  %389 = vmatpush1.msra.mxu0 0.0
  %390 = vmatprep.subr.mxu0 0.0
  %391 = vmatpush1.msra.mxu0 0.0
  %392 = vmatprep.subr.mxu0 0.0
  %393 = vmatpush1.msra.mxu0 0.0
  %394 = vmatprep.subr.mxu0 0.0
  %395 = vmatpush1.msra.mxu0 0.0
  %396 = vmatprep.subr.mxu0 0.0
  %397 = vmatpush1.msra.mxu0 0.0
  %398 = vmatprep.subr.mxu0 0.0
  %399 = vmatpush1.msra.mxu0 0.0
  %400 = vmatprep.subr.mxu0 0.0
  %401 = vmatpush1.msra.mxu0 0.0
  %402 = vmatprep.subr.mxu0 0.0
  %403 = vmatpush1.msra.mxu0 0.0
  %404 = vmatprep.subr.mxu0 0.0
  %405 = vmatpush1.msra.mxu0 0.0
  %406 = vmatprep.subr.mxu0 0.0
  %407 = vmatpush1.msra.mxu0 0.0
  %408 = vmatprep.subr.mxu0 0.0
  %409 = vmatpush1.msra.mxu0 0.0
  %410 = vmatprep.subr.mxu0 0.0
  %411 = vmatpush1.msra.mxu0 0.0
  %412 = vmatprep.mubr.f32.mxu0 0.0
  %413 = vmatmul.mubr.f32.gmra.mrb[0].mxu0 %v346
  %v414 = vpop.f32.mrb[0].mxu0
  %v415 = vadd.f32 0.0, %v414
  %v416 = vpop.f32.mrb[0].mxu0
  %417 = vdwg.mxu0
  %v418 = vrcp.pop %v218
  %v419 = vmul.f32 %v415, %v418
  %v420 = vld [vmem:[%s5] sm:$0x1]
  %v422 = vlaneseq
  %v423 = vshrl.u32 %v422, 7
  %v424 = vsub.s32 0, %v423
  %v425 = vrot.slane %v420, %v424
  %v427 = vadd.f32 %v419, %v425
  %vm428 = vcmask 15360
  %v429 = vsel %vm428, %v427, -inf
  %430 = vmax.xlane.f32.xlu0 %v429
  %v431 = vpop.xlane.xlu0 %430
  %v432 = vsub.f32 %v427, %v431
  %v433 = vmul.f32 %v432, 1.442695
  %v434 = vpow.pop %v433
  %v435 = vsel %vm428, %v434, 0.0
  %436 = vadd.xlane.f32.xlu0 %v435
  %v437 = vpop.xlane.xlu0 %436
  %v438 = vrcp.pop %v437
  %v439 = vmul.f32 %v434, %v438
  %v440 = vlog2.pop %v437
  %v441 = vmul.f32 %v440, 0.6931472
  %v442 = vsub.f32 %v432, %v441
  %443 = vset.pattern.permute.xlu0 0
  %444 = vperm.xlu0 %443, %v26
  %v445 = vpop.permute.xlu0 %444
  %vm446 = vcmp.eq.s32.totalorder %v445, %v28
  %v447 = vsel %vm446, 1, 0
  %v448 = vcvt.s32.f32 %v447
  %v449 = vmul.f32 %v448, %v442
  %v450 = vsel %vm428, %v449, 0.0
  %451 = vadd.xlane.f32.xlu0 %v450
  %v452 = vpop.xlane.xlu0 %451
  %v453 = vsub.f32 0.0, %v452
  %vm454 = vcmp.ge.f32.partialorder %v427, %v431
  %v455 = vsel %vm454, %v28, 2
  %v456 = vsel %vm428, %v455, 2147483647
  %v457 = vand.u32 %v456, 65535
  %v458 = vshra.s32 %v456, 16
  %v459 = vcvt.s32.f32 %v457
  %v460 = vcvt.s32.f32 %v458
  %461 = vmin.xlane.f32.xlu0 %v460
  %v462 = vpop.xlane.xlu0 %461
  %vm463 = vcmp.eq.f32.partialorder %v460, %v462
  %v464 = vsel %vm463, %v459, inf
  %465 = vmin.xlane.f32.xlu0 %v464
  %v466 = vpop.xlane.xlu0 %465
  %v467 = vcvt.f32.s32 %v466
  %v468 = vcvt.f32.s32 %v462
  %v469 = vshll.u32 %v468, 16
  %v470 = vadd.s32 %v469, %v467
  %v471 = vcvt.s32.f32 %v470
  %vm472 = vcmp.eq.s32.totalorder %v470, %v26
  %v473 = vsel %vm472, 1, 0
  %v474 = vcvt.s32.f32 %v473
  %vm475 = vcmp.eq.s32.totalorder %v470, 1
  %vm476 = vcmp.eq.s32.totalorder %v26, 1
  %vm477 = vmand %vm475, %vm476
  %v478 = vsel %vm477, 1, 0
  %v479 = vcvt.s32.f32 %v478
  %vm480 = vmxor %vm476, 1
  %vm481 = vmand %vm475, %vm480
  %v482 = vsel %vm481, 1, 0
  %v483 = vcvt.s32.f32 %v482
  %vm484 = vmxor %vm475, 1
  %vm485 = vmand %vm484, %vm476
  %v486 = vsel %vm485, 1, 0
  %v487 = vcvt.s32.f32 %v486
  %489 = vrot.lane.b32.xlu0 %v474, 1
  %v490 = vpop.permute.xlu0 %489
  %493 = vrot.lane.b32.xlu0 %v479, 2
  %v494 = vpop.permute.xlu0 %493
  %497 = vrot.lane.b32.xlu0 %v483, 3
  %v498 = vpop.permute.xlu0 %497
  %501 = vrot.lane.b32.xlu0 %v487, 4
  %v502 = vpop.permute.xlu0 %501
  %vm504 = vcmask 7168
  %v505 = vsel %vm504, %v453, %v490
  %v506 = vsel %vm428, %v505, %v494
  %vm507 = vcmask 23552
  %v508 = vsel %vm507, %v506, %v498
  %vm509 = vcmask 31744
  %v510 = vsel %vm509, %v508, %v502
  %vm511 = vcmask 39936
  %v512 = vsel %vm511, %v510, 0.0
  %v513 = vrot.slane %v512, 4
  %v514 = vadd.f32 %v512, %v513
  %v515 = vrot.slane %v514, 2
  %v516 = vadd.f32 %v514, %v515
  %v517 = vrot.slane %v516, 1
  %v518 = vadd.f32 %v516, %v517
  %v519 = vmul.f32 %v518, 0.125
  %v520 = vmul.f32 %v518, 2.0
  %522 = vrot.lane.b32.xlu0 %v518, 127
  %v523 = vpop.permute.xlu0 %522
  %v525 = vadd.f32 %v520, %v523
  %526 = vrot.lane.b32.xlu0 %v518, 126
  %v527 = vpop.permute.xlu0 %526
  %v529 = vadd.f32 %v525, %v527
  %vm530 = vcmp.gt.f32.partialorder %v529, 0.0
  %v531 = vmax.f32 %v529, 1.0
  %v532 = vrcp.pop %v531
  %v533 = vmul.f32 %v520, %v532
  %v534 = vsel %vm530, %v533, 0.0
  %536 = vrot.lane.b32.xlu0 %v439, 2
  %v537 = vpop.permute.xlu0 %536
  %539 = vrot.lane.b32.xlu0 %v474, 5
  %v540 = vpop.permute.xlu0 %539
  %v542 = vsel %vm428, %v427, %v537
  %v543 = vsel %vm509, %v542, %v471
  %v544 = vsel %vm511, %v543, %v540
  %vm545 = vcmask 48128
  %v546 = vsel %vm545, %v544, 0.0
  %vm547 = vcmp.eq.s32.totalorder %v28, 6
  %vm548 = vcmp.eq.s32.totalorder %v28, 7
  %vm549 = vcmp.eq.s32.totalorder %v28, 8
  %551 = vrot.lane.b32.xlu0 %v534, 126
  %v552 = vpop.permute.xlu0 %551
  %s553 = vtos %v552
  %v554 = vstv %s553
  %v556 = vsel %vm549, %v554, %v546
  %557 = vset.pattern.permute.xlu0 1
  %558 = vperm.xlu0 %557, %v518
  %v559 = vpop.permute.xlu0 %558
  %v561 = vsel %vm548, %v559, %v556
  %563 = vset.pattern.permute.xlu0 0
  %564 = vperm.xlu0 %563, %v519
  %v565 = vpop.permute.xlu0 %564
  %v567 = vsel %vm547, %v565, %v561
  %568 = vst [vmem:[%s6] sm:$0xff] %v567
  // Predicated region
  $region26: #{train_operation.1} parent=0 // pred_check
    _
  $region27: #{train_operation.1} parent=0 // pred_check_branch
    %570 = sbr.rel (0) target = $region29
  $region28: #{train_operation.1} parent=0 // pred_region
    _
  $region29: #{train_operation.1} parent=0 // pred_fallthru
    _
  // Predicated region
  $region30: #{train_operation.1} parent=0 // pred_check
    _
  $region31: #{train_operation.1} parent=0 // pred_check_branch
    %572 = sbr.rel (0) target = $region33
  $region32: #{train_operation.1} parent=0 // pred_region
    _
  $region33: #{train_operation.1} parent=0 // pred_fallthru
    _

</llo_original>
